<compile_context>
chip_gen: v5e
topology: v5e:2x2
jax: 0.10.0
libtpu: 0.0.40
codegen_flags: <defaults>
</compile_context>

<pallas_src>
import functools

import jax
import jax.numpy as jnp
import numpy as np
from jax.experimental import pallas as pl
from jax.experimental.pallas import tpu as pltpu

_DROP_P = 0.3
_LANE = 128


# --------------------------------------------------------------------------- #
# Kernel
# --------------------------------------------------------------------------- #
def _dnn_decoder_kernel(*refs, training):
    """Fused 4-layer MLP forward for one batch tile.

    Refs (eval):     x, w1, b1, w2, b2, w3, b3, w4, b4, out
    Refs (training): x, w1, b1, w2, b2, w3, b3, w4, b4, mask1, mask2, out
    Weights are (in, out) bf16; biases are (1, out) f32; masks are pre-scaled
    f32 keep-masks (0 or 1/(1-p)).
    """
    if training:
        (x_ref, w1_ref, b1_ref, w2_ref, b2_ref, w3_ref, b3_ref,
         w4_ref, b4_ref, m1_ref, m2_ref, o_ref) = refs
    else:
        (x_ref, w1_ref, b1_ref, w2_ref, b2_ref, w3_ref, b3_ref,
         w4_ref, b4_ref, o_ref) = refs

    def dense(h, w_ref, b_ref, relu):
        # bf16 operands into the MXU, f32 accumulation, fused bias (+ ReLU).
        y = jnp.dot(h.astype(jnp.bfloat16), w_ref[...],
                    preferred_element_type=jnp.float32)
        y = y + b_ref[...]
        if relu:
            y = jnp.maximum(y, 0.0)
        return y

    h = dense(x_ref[...], w1_ref, b1_ref, relu=True)
    if training:
        h = h * m1_ref[...]                      # dropout (pre-scaled keep mask)
    h = dense(h, w2_ref, b2_ref, relu=True)
    if training:
        h = h * m2_ref[...]
    h = dense(h, w3_ref, b3_ref, relu=True)
    h = dense(h, w4_ref, b4_ref, relu=False)
    o_ref[...] = h.astype(o_ref.dtype)


# --------------------------------------------------------------------------- #
# One-time parameter preparation (transpose + bf16 cast + lane padding)
# --------------------------------------------------------------------------- #
def prepare_params(params):
    """params: PyTorch layout [(w (out,in), b (out,))] * 4.

    Returns weights pre-transposed to (in, out) in bf16, biases as (1, out)
    f32, with the final layer's output dim zero-padded up to a multiple of 128
    so the kernel's output stores are lane-dense. Call ONCE, reuse per forward.
    """
    (w1, b1), (w2, b2), (w3, b3), (w4, b4) = params
    d_out = w4.shape[0]
    d_out_pad = max(_LANE, ((d_out + _LANE - 1) // _LANE) * _LANE)

    def prep(w, b, pad_out=0):
        wt = jnp.transpose(w).astype(jnp.bfloat16)
        br = b.astype(jnp.float32).reshape(1, -1)
        if pad_out:
            wt = jnp.pad(wt, ((0, 0), (0, pad_out)))
            br = jnp.pad(br, ((0, 0), (0, pad_out)))
        return wt, br

    w1t, b1r = prep(w1, b1)
    w2t, b2r = prep(w2, b2)
    w3t, b3r = prep(w3, b3)
    w4t, b4r = prep(w4, b4, pad_out=d_out_pad - d_out)
    return {"weights": (w1t, b1r, w2t, b2r, w3t, b3r, w4t, b4r),
            "d_out": d_out, "d_out_pad": d_out_pad}


def make_dropout_masks(key, batch, w1, w2, drop_p=_DROP_P):
    """Pre-scaled keep masks (0 or 1/(1-p)) for the two dropout sites."""
    k1, k2 = jax.random.split(key)
    scale = jnp.float32(1.0 / (1.0 - drop_p))
    m1 = jax.random.bernoulli(k1, 1.0 - drop_p, (batch, w1)).astype(jnp.float32) * scale
    m2 = jax.random.bernoulli(k2, 1.0 - drop_p, (batch, w2)).astype(jnp.float32) * scale
    return m1, m2


# --------------------------------------------------------------------------- #
# Forward wrapper
# --------------------------------------------------------------------------- #
def dnn_decoder_forward(x, prepared, *, training=False, dropout_masks=None):
    """x: (B, D_in) f32 -> (B, D_out) f32."""
    w1t, b1r, w2t, b2r, w3t, b3r, w4t, b4r = prepared["weights"]
    d_out, d_out_pad = prepared["d_out"], prepared["d_out_pad"]
    B, D_in = x.shape
    W1, W2, W3 = w1t.shape[1], w2t.shape[1], w3t.shape[1]

    # Batch tile: big enough to feed all MXU rows; multiple of 8 (f32 sublanes).
    # For large B this gives TB=256 and >= 2 "parallel" grid steps (v7x 2 TCs).
    B8 = ((B + 7) // 8) * 8
    TB = min(B8, 256)
    B_pad = ((B + TB - 1) // TB) * TB
    if B_pad != B:
        x = jnp.pad(x, ((0, B_pad - B), (0, 0)))

    const = lambda i: (0, 0)    # constant index_map -> weights stay VMEM-resident
    batch = lambda i: (i, 0)

    in_specs = [
        pl.BlockSpec((TB, D_in), batch),                                 # x tile
        pl.BlockSpec((D_in, W1), const), pl.BlockSpec((1, W1), const),
        pl.BlockSpec((W1, W2), const), pl.BlockSpec((1, W2), const),
        pl.BlockSpec((W2, W3), const), pl.BlockSpec((1, W3), const),
        pl.BlockSpec((W3, d_out_pad), const), pl.BlockSpec((1, d_out_pad), const),
    ]
    operands = [x, w1t, b1r, w2t, b2r, w3t, b3r, w4t, b4r]

    if training:
        m1, m2 = dropout_masks
        assert m1.shape == (B, W1) and m2.shape == (B, W2)
        if B_pad != B:
            m1 = jnp.pad(m1, ((0, B_pad - B), (0, 0)))
            m2 = jnp.pad(m2, ((0, B_pad - B), (0, 0)))
        in_specs += [pl.BlockSpec((TB, W1), batch), pl.BlockSpec((TB, W2), batch)]
        operands += [m1, m2]

    kernel = functools.partial(_dnn_decoder_kernel, training=training)
    out = pl.pallas_call(
        kernel,
        out_shape=jax.ShapeDtypeStruct((B_pad, d_out_pad), jnp.float32),
        grid=(B_pad // TB,),
        in_specs=in_specs,
        out_specs=pl.BlockSpec((TB, d_out_pad), batch),
        compiler_params=pltpu.CompilerParams(
            dimension_semantics=("parallel",)),
    )(*operands)
    return out[:B, :d_out]


# --------------------------------------------------------------------------- #
# Init + references + self-test
# --------------------------------------------------------------------------- #
def init_params(key, d_in, w1, w2, w3, d_out):
    """nn.Linear default init: uniform(+-1/sqrt(fan_in)), PyTorch (out, in) layout."""
    dims = [(d_in, w1), (w1, w2), (w2, w3), (w3, d_out)]
    params = []
    for fan_in, fan_out in dims:
        key, kw, kb = jax.random.split(key, 3)
        bound = 1.0 / np.sqrt(fan_in)
        w = jax.random.uniform(kw, (fan_out, fan_in), jnp.float32,
                               minval=-bound, maxval=bound)
        b = jax.random.uniform(kb, (fan_out,), jnp.float32,
                               minval=-bound, maxval=bound)
        params.append((w, b))
    return params


def _reference_bf16(x, params, masks=None):
    """Pure-jnp reference with the same bf16-matmul / f32-accumulate recipe."""
    (w1, b1), (w2, b2), (w3, b3), (w4, b4) = params

    def dense(h, w, b, relu):
        y = jnp.dot(h.astype(jnp.bfloat16), w.T.astype(jnp.bfloat16),
                    preferred_element_type=jnp.float32) + b
        return jnp.maximum(y, 0.0) if relu else y

    h = dense(x, w1, b1, True)
    if masks is not None:
        h = h * masks[0]
    h = dense(h, w2, b2, True)
    if masks is not None:
        h = h * masks[1]
    h = dense(h, w3, b3, True)
    return dense(h, w4, b4, False)


def _reference_f32(x, params):
    """Full-f32 eval-mode reference (PyTorch eval semantics, dropout = identity)."""
    (w1, b1), (w2, b2), (w3, b3), (w4, b4) = params
    h = jnp.maximum(x @ w1.T + b1, 0.0)
    h = jnp.maximum(h @ w2.T + b2, 0.0)
    h = jnp.maximum(h @ w3.T + b3, 0.0)
    return h @ w4.T + b4


if __name__ == "__main__":
    key = jax.random.PRNGKey(0)
    kx, kp, kd = jax.random.split(key, 3)

    # Small shapes consistent with the module: x is (batch, D_in).
    B, D_in, W1, W2, W3, D_out = 16, 32, 128, 256, 128, 16
    x = jax.random.normal(kx, (B, D_in), dtype=jnp.float32)
    params = init_params(kp, D_in, W1, W2, W3, D_out)
    prepared = prepare_params(params)   # one-time transpose + bf16 cast + lane pad

    # --- Eval mode (dropout identity, matches PyTorch eval) -----------------
    out = jax.block_until_ready(dnn_decoder_forward(x, prepared, training=False))
    assert out.shape == (B, D_out), out.shape
    np.testing.assert_allclose(np.asarray(out),
                               np.asarray(_reference_bf16(x, params)),
                               rtol=1e-2, atol=1e-2)
    np.testing.assert_allclose(np.asarray(out),
                               np.asarray(_reference_f32(x, params)),
                               rtol=5e-2, atol=5e-2)

    # --- Training mode (deterministic wrapper-generated dropout masks) ------
    # TODO(synk): masks will not match PyTorch's RNG stream (only the Bernoulli
    # keep-prob / 1/(1-p) scaling semantics are preserved).
    masks = make_dropout_masks(kd, B, W1, W2)
    out_tr = jax.block_until_ready(
        dnn_decoder_forward(x, prepared, training=True, dropout_masks=masks))
    assert out_tr.shape == (B, D_out), out_tr.shape
    np.testing.assert_allclose(np.asarray(out_tr),
                               np.asarray(_reference_bf16(x, params, masks=masks)),
                               rtol=1e-2, atol=1e-2)

    print("KERNEL_OK")
</pallas_src>

<mosaic_0001>
module attributes {stable_mosaic.version = 11 : i64} {
  func.func @_dnn_decoder_kernel(%arg0: i32, %arg1: memref<16x32xf32, #tpu.memory_space<vmem>>, %arg2: memref<32x128xbf16, #tpu.memory_space<vmem>>, %arg3: memref<1x128xf32, #tpu.memory_space<vmem>>, %arg4: memref<128x256xbf16, #tpu.memory_space<vmem>>, %arg5: memref<1x256xf32, #tpu.memory_space<vmem>>, %arg6: memref<256x128xbf16, #tpu.memory_space<vmem>>, %arg7: memref<1x128xf32, #tpu.memory_space<vmem>>, %arg8: memref<128x128xbf16, #tpu.memory_space<vmem>>, %arg9: memref<1x128xf32, #tpu.memory_space<vmem>>, %arg10: memref<16x128xf32, #tpu.memory_space<vmem>>) attributes {dimension_semantics = [#tpu.dimension_semantics<parallel>], iteration_bounds = array<i64: 1>, scalar_prefetch = 0 : i64, scratch_operands = 0 : i64, tpu.core_type = #tpu.core_type<tc>, window_params = [{transform_indices = @transform_0, window_bounds = array<i64: 16, 32>}, {pipeline_mode = #tpu.pipeline_mode<synchronous>, transform_indices = @transform_1, window_bounds = array<i64: 32, 128>}, {pipeline_mode = #tpu.pipeline_mode<synchronous>, transform_indices = @transform_2, window_bounds = array<i64: 1, 128>}, {pipeline_mode = #tpu.pipeline_mode<synchronous>, transform_indices = @transform_3, window_bounds = array<i64: 128, 256>}, {pipeline_mode = #tpu.pipeline_mode<synchronous>, transform_indices = @transform_4, window_bounds = array<i64: 1, 256>}, {pipeline_mode = #tpu.pipeline_mode<synchronous>, transform_indices = @transform_5, window_bounds = array<i64: 256, 128>}, {pipeline_mode = #tpu.pipeline_mode<synchronous>, transform_indices = @transform_6, window_bounds = array<i64: 1, 128>}, {pipeline_mode = #tpu.pipeline_mode<synchronous>, transform_indices = @transform_7, window_bounds = array<i64: 128, 128>}, {pipeline_mode = #tpu.pipeline_mode<synchronous>, transform_indices = @transform_8, window_bounds = array<i64: 1, 128>}, {transform_indices = @transform_9, window_bounds = array<i64: 16, 128>}]} {
    %c0 = arith.constant 0 : index
    %c0_0 = arith.constant 0 : index
    %0 = vector.load %arg1[%c0, %c0_0] : memref<16x32xf32, #tpu.memory_space<vmem>>, vector<16x32xf32>
    %1 = arith.truncf %0 : vector<16x32xf32> to vector<16x32xbf16>
    %c0_1 = arith.constant 0 : index
    %c0_2 = arith.constant 0 : index
    %2 = vector.load %arg2[%c0_1, %c0_2] : memref<32x128xbf16, #tpu.memory_space<vmem>>, vector<32x128xbf16>
    %cst = arith.constant dense<0.000000e+00> : vector<16x128xf32>
    %3 = tpu.matmul %1, %2, %cst {dimension_numbers = #tpu.dot_dimension_numbers<[1], [0], [0], [1], [0, 0, 1, 1], [], []>} : vector<16x32xbf16>, vector<32x128xbf16>, vector<16x128xf32> -> vector<16x128xf32>
    %c0_3 = arith.constant 0 : index
    %c0_4 = arith.constant 0 : index
    %4 = vector.load %arg3[%c0_3, %c0_4] : memref<1x128xf32, #tpu.memory_space<vmem>>, vector<1x128xf32>
    %5 = vector.broadcast %4 : vector<1x128xf32> to vector<16x128xf32>
    %6 = arith.addf %3, %5 : vector<16x128xf32>
    %cst_5 = arith.constant 0.000000e+00 : f32
    %7 = vector.broadcast %cst_5 : f32 to vector<16x128xf32>
    %8 = arith.maximumf %6, %7 : vector<16x128xf32>
    %9 = arith.truncf %8 : vector<16x128xf32> to vector<16x128xbf16>
    %c0_6 = arith.constant 0 : index
    %c0_7 = arith.constant 0 : index
    %10 = vector.load %arg4[%c0_6, %c0_7] : memref<128x256xbf16, #tpu.memory_space<vmem>>, vector<128x256xbf16>
    %cst_8 = arith.constant dense<0.000000e+00> : vector<16x256xf32>
    %11 = tpu.matmul %9, %10, %cst_8 {dimension_numbers = #tpu.dot_dimension_numbers<[1], [0], [0], [1], [0, 0, 1, 1], [], []>} : vector<16x128xbf16>, vector<128x256xbf16>, vector<16x256xf32> -> vector<16x256xf32>
    %c0_9 = arith.constant 0 : index
    %c0_10 = arith.constant 0 : index
    %12 = vector.load %arg5[%c0_9, %c0_10] : memref<1x256xf32, #tpu.memory_space<vmem>>, vector<1x256xf32>
    %13 = vector.broadcast %12 : vector<1x256xf32> to vector<16x256xf32>
    %14 = arith.addf %11, %13 : vector<16x256xf32>
    %cst_11 = arith.constant 0.000000e+00 : f32
    %15 = vector.broadcast %cst_11 : f32 to vector<16x256xf32>
    %16 = arith.maximumf %14, %15 : vector<16x256xf32>
    %17 = arith.truncf %16 : vector<16x256xf32> to vector<16x256xbf16>
    %c0_12 = arith.constant 0 : index
    %c0_13 = arith.constant 0 : index
    %18 = vector.load %arg6[%c0_12, %c0_13] : memref<256x128xbf16, #tpu.memory_space<vmem>>, vector<256x128xbf16>
    %cst_14 = arith.constant dense<0.000000e+00> : vector<16x128xf32>
    %19 = tpu.matmul %17, %18, %cst_14 {dimension_numbers = #tpu.dot_dimension_numbers<[1], [0], [0], [1], [0, 0, 1, 1], [], []>} : vector<16x256xbf16>, vector<256x128xbf16>, vector<16x128xf32> -> vector<16x128xf32>
    %c0_15 = arith.constant 0 : index
    %c0_16 = arith.constant 0 : index
    %20 = vector.load %arg7[%c0_15, %c0_16] : memref<1x128xf32, #tpu.memory_space<vmem>>, vector<1x128xf32>
    %21 = vector.broadcast %20 : vector<1x128xf32> to vector<16x128xf32>
    %22 = arith.addf %19, %21 : vector<16x128xf32>
    %cst_17 = arith.constant 0.000000e+00 : f32
    %23 = vector.broadcast %cst_17 : f32 to vector<16x128xf32>
    %24 = arith.maximumf %22, %23 : vector<16x128xf32>
    %25 = arith.truncf %24 : vector<16x128xf32> to vector<16x128xbf16>
    %c0_18 = arith.constant 0 : index
    %c0_19 = arith.constant 0 : index
    %26 = vector.load %arg8[%c0_18, %c0_19] : memref<128x128xbf16, #tpu.memory_space<vmem>>, vector<128x128xbf16>
    %cst_20 = arith.constant dense<0.000000e+00> : vector<16x128xf32>
    %27 = tpu.matmul %25, %26, %cst_20 {dimension_numbers = #tpu.dot_dimension_numbers<[1], [0], [0], [1], [0, 0, 1, 1], [], []>} : vector<16x128xbf16>, vector<128x128xbf16>, vector<16x128xf32> -> vector<16x128xf32>
    %c0_21 = arith.constant 0 : index
    %c0_22 = arith.constant 0 : index
    %28 = vector.load %arg9[%c0_21, %c0_22] : memref<1x128xf32, #tpu.memory_space<vmem>>, vector<1x128xf32>
    %29 = vector.broadcast %28 : vector<1x128xf32> to vector<16x128xf32>
    %30 = arith.addf %27, %29 : vector<16x128xf32>
    %c0_23 = arith.constant 0 : index
    %c0_24 = arith.constant 0 : index
    %31 = vector.load %arg10[%c0_23, %c0_24] : memref<16x128xf32, #tpu.memory_space<vmem>>, vector<16x128xf32>
    tpu.vector_store %arg10[%c0_23, %c0_24], %30 {strides = array<i32>} : memref<16x128xf32, #tpu.memory_space<vmem>>, vector<16x128xf32>,
    return
  }
  func.func @transform_0(%arg0: i32) -> (i32, i32) {
    %c0_i32 = arith.constant 0 : i32
    %c0_i32_0 = arith.constant 0 : i32
    return %arg0, %c0_i32 : i32, i32
  }
  func.func @transform_1(%arg0: i32) -> (i32, i32) {
    %c0_i32 = arith.constant 0 : i32
    %c0_i32_0 = arith.constant 0 : i32
    %c0_i32_1 = arith.constant 0 : i32
    return %c0_i32, %c0_i32_0 : i32, i32
  }
  func.func @transform_2(%arg0: i32) -> (i32, i32) {
    %c0_i32 = arith.constant 0 : i32
    %c0_i32_0 = arith.constant 0 : i32
    %c0_i32_1 = arith.constant 0 : i32
    return %c0_i32, %c0_i32_0 : i32, i32
  }
  func.func @transform_3(%arg0: i32) -> (i32, i32) {
    %c0_i32 = arith.constant 0 : i32
    %c0_i32_0 = arith.constant 0 : i32
    %c0_i32_1 = arith.constant 0 : i32
    return %c0_i32, %c0_i32_0 : i32, i32
  }
  func.func @transform_4(%arg0: i32) -> (i32, i32) {
    %c0_i32 = arith.constant 0 : i32
    %c0_i32_0 = arith.constant 0 : i32
    %c0_i32_1 = arith.constant 0 : i32
    return %c0_i32, %c0_i32_0 : i32, i32
  }
  func.func @transform_5(%arg0: i32) -> (i32, i32) {
    %c0_i32 = arith.constant 0 : i32
    %c0_i32_0 = arith.constant 0 : i32
    %c0_i32_1 = arith.constant 0 : i32
    return %c0_i32, %c0_i32_0 : i32, i32
  }
  func.func @transform_6(%arg0: i32) -> (i32, i32) {
    %c0_i32 = arith.constant 0 : i32
    %c0_i32_0 = arith.constant 0 : i32
    %c0_i32_1 = arith.constant 0 : i32
    return %c0_i32, %c0_i32_0 : i32, i32
  }
  func.func @transform_7(%arg0: i32) -> (i32, i32) {
    %c0_i32 = arith.constant 0 : i32
    %c0_i32_0 = arith.constant 0 : i32
    %c0_i32_1 = arith.constant 0 : i32
    return %c0_i32, %c0_i32_0 : i32, i32
  }
  func.func @transform_8(%arg0: i32) -> (i32, i32) {
    %c0_i32 = arith.constant 0 : i32
    %c0_i32_0 = arith.constant 0 : i32
    %c0_i32_1 = arith.constant 0 : i32
    return %c0_i32, %c0_i32_0 : i32, i32
  }
  func.func @transform_9(%arg0: i32) -> (i32, i32) {
    %c0_i32 = arith.constant 0 : i32
    %c0_i32_0 = arith.constant 0 : i32
    return %arg0, %c0_i32 : i32, i32
  }
}

</mosaic_0001>

<llo_original>
// kernel: tpu_custom_call.1
$region0: #{tpu_custom_call.1}
  #allocation0 [shape = 'u32[]', space=smem, size = 0x4, offset = 0x4, fixed_abs, tag = 'smem constant byte address 0x4 - core index']
  #allocation1 [shape = 'u32[72,128]{1,0:T(1,128)}', space=vmem, size = 0x9000, scoped, tag = 'internal scratch']
  %s0 = inlined_call_operand.hbm [shape: f32[16,32], index: 0, kind: input, shape index: {}]
  %s1 = inlined_call_operand.hbm [shape: bf16[32,128], index: 1, kind: input, shape index: {}]
  %s2 = inlined_call_operand.vmem [shape: f32[1,128], index: 2, kind: input, shape index: {}]
  %s3 = inlined_call_operand.hbm [shape: bf16[128,256], index: 3, kind: input, shape index: {}]
  %s4 = inlined_call_operand.vmem [shape: f32[1,256], index: 4, kind: input, shape index: {}]
  %s5 = inlined_call_operand.hbm [shape: bf16[256,128], index: 5, kind: input, shape index: {}]
  %s6 = inlined_call_operand.vmem [shape: f32[1,128], index: 6, kind: input, shape index: {}]
  %s7 = inlined_call_operand.hbm [shape: bf16[128,128], index: 7, kind: input, shape index: {}]
  %s8 = inlined_call_operand.vmem [shape: f32[1,128], index: 8, kind: input, shape index: {}]
  %s9 = inlined_call_operand.hbm [shape: f32[16,128], index: 9, kind: output, shape index: {}]
  %s10 = sld [smem:[#allocation0]]
  $region66: #{tpu_custom_call.1} parent=0
    _
  %s12 = ssub.s32 1, %s10
  %s13 = scalar_select 0, %s12, %s10
  $region1: #{tpu_custom_call.1} parent=0
    #allocation2 [shape = 'u8[8192]{0}', space=vmem, size = 0x2000, scoped, tag = 'input window, operand 0, single buffered']
    #allocation3 [shape = 's32[1]{0}', space=sflag, size = 0x4, scoped, tag = 'scoped memory for tpu_custom_call.1']
    #allocation4 [shape = 's32[1]{0}', space=sflag, size = 0x4, scoped, tag = 'scoped memory for tpu_custom_call.1']
    #allocation5 [shape = 'u8[8192]{0}', space=vmem, size = 0x2000, scoped, tag = 'input window, operand 1, single buffered']
    #allocation6 [shape = 's32[1]{0}', space=sflag, size = 0x4, scoped, tag = 'scoped memory for tpu_custom_call.1']
    #allocation7 [shape = 'u8[65536]{0}', space=vmem, size = 0x10000, scoped, tag = 'input window, operand 3, single buffered']
    #allocation8 [shape = 'u8[65536]{0}', space=vmem, size = 0x10000, scoped, tag = 'input window, operand 5, single buffered']
    #allocation9 [shape = 's32[1]{0}', space=sflag, size = 0x4, scoped, tag = 'scoped memory for tpu_custom_call.1']
    #allocation10 [shape = 'u8[32768]{0}', space=vmem, size = 0x8000, scoped, tag = 'input window, operand 7, single buffered']
    #allocation11 [shape = 'u8[8192]{0}', space=vmem, size = 0x2000, scoped, tag = 'output window, operand 0, single buffered']
    %14 = vsyncpa [#allocation3], 0
    %15 = vsyncpa [#allocation6], 0
    %16 = vsyncpa [#allocation9], 0
    %17 = vsyncpa [#allocation4], 0
    // Predicated region
    $region2: #{tpu_custom_call.1} parent=1 // pred_check
      _
    $region3: #{tpu_custom_call.1} parent=1 // pred_check_branch
      %19 = sbr.rel (0) target = $region5
    $region4: #{tpu_custom_call.1} parent=1 // pred_region
      %21 = vsyncadd [#allocation3], 0
      %s22 = sshll.u32 %s0, 4
      %s23 = int_to_ptr.hbm [resolvable:$true] %s22
      %s24 = sshll.u32 [#allocation2], 4
      %s25 = int_to_ptr.vmem [resolvable:$true] %s24
      %30 = dma.hbm_to_vmem [thread:$0]  %s23, 256, %s25, [#allocation3], 128, 128, 8
    $region5: #{tpu_custom_call.1} parent=1 // pred_fallthru
      _
    // Predicated region
    $region6: #{tpu_custom_call.1} parent=1 // pred_check
      _
    $region7: #{tpu_custom_call.1} parent=1 // pred_check_branch
      %32 = sbr.rel (0) target = $region9
    $region8: #{tpu_custom_call.1} parent=1 // pred_region
      %34 = vsyncadd [#allocation6], 0
      %s35 = sshll.u32 %s1, 4
      %s36 = int_to_ptr.hbm [resolvable:$true] %s35
      %s37 = sshll.u32 [#allocation5], 4
      %s38 = int_to_ptr.vmem [resolvable:$true] %s37
      %43 = dma.hbm_to_vmem [thread:$0]  %s36, 256, %s38, [#allocation6], 64, 64, 4
    $region9: #{tpu_custom_call.1} parent=1 // pred_fallthru
      _
    // Predicated region
    $region10: #{tpu_custom_call.1} parent=1 // pred_check
      _
    $region11: #{tpu_custom_call.1} parent=1 // pred_check_branch
      %45 = sbr.rel (0) target = $region13
    $region12: #{tpu_custom_call.1} parent=1 // pred_region
      _
    $region13: #{tpu_custom_call.1} parent=1 // pred_fallthru
      _
    // Predicated region
    $region14: #{tpu_custom_call.1} parent=1 // pred_check
      _
    $region15: #{tpu_custom_call.1} parent=1 // pred_check_branch
      %47 = sbr.rel (0) target = $region17
    $region16: #{tpu_custom_call.1} parent=1 // pred_region
      %49 = vsyncadd [#allocation6], 0
      %s50 = sshll.u32 %s3, 4
      %s51 = int_to_ptr.hbm [resolvable:$true] %s50
      %s52 = sshll.u32 [#allocation7], 4
      %s53 = int_to_ptr.vmem [resolvable:$true] %s52
      %58 = dma.hbm_to_vmem [thread:$0]  %s51, 2048, %s53, [#allocation6], 128, 128, 8
    $region17: #{tpu_custom_call.1} parent=1 // pred_fallthru
      _
    // Predicated region
    $region18: #{tpu_custom_call.1} parent=1 // pred_check
      _
    $region19: #{tpu_custom_call.1} parent=1 // pred_check_branch
      %60 = sbr.rel (0) target = $region21
    $region20: #{tpu_custom_call.1} parent=1 // pred_region
      _
    $region21: #{tpu_custom_call.1} parent=1 // pred_fallthru
      _
    // Predicated region
    $region22: #{tpu_custom_call.1} parent=1 // pred_check
      _
    $region23: #{tpu_custom_call.1} parent=1 // pred_check_branch
      %62 = sbr.rel (0) target = $region25
    $region24: #{tpu_custom_call.1} parent=1 // pred_region
      %64 = vsyncadd [#allocation9], 0
      %s65 = sshll.u32 %s5, 4
      %s66 = int_to_ptr.hbm [resolvable:$true] %s65
      %s67 = sshll.u32 [#allocation8], 4
      %s68 = int_to_ptr.vmem [resolvable:$true] %s67
      %73 = dma.hbm_to_vmem [thread:$0]  %s66, 2048, %s68, [#allocation9], 64, 64, 4
    $region25: #{tpu_custom_call.1} parent=1 // pred_fallthru
      _
    // Predicated region
    $region26: #{tpu_custom_call.1} parent=1 // pred_check
      _
    $region27: #{tpu_custom_call.1} parent=1 // pred_check_branch
      %75 = sbr.rel (0) target = $region29
    $region28: #{tpu_custom_call.1} parent=1 // pred_region
      _
    $region29: #{tpu_custom_call.1} parent=1 // pred_fallthru
      _
    // Predicated region
    $region30: #{tpu_custom_call.1} parent=1 // pred_check
      _
    $region31: #{tpu_custom_call.1} parent=1 // pred_check_branch
      %77 = sbr.rel (0) target = $region33
    $region32: #{tpu_custom_call.1} parent=1 // pred_region
      %79 = vsyncadd [#allocation9], 0
      %s80 = sshll.u32 %s7, 4
      %s81 = int_to_ptr.hbm [resolvable:$true] %s80
      %s82 = sshll.u32 [#allocation10], 4
      %s83 = int_to_ptr.vmem [resolvable:$true] %s82
      %88 = dma.hbm_to_vmem [thread:$0]  %s81, 1024, %s83, [#allocation9], 64, 64, 4
    $region33: #{tpu_custom_call.1} parent=1 // pred_fallthru
      _
    // Predicated region
    $region34: #{tpu_custom_call.1} parent=1 // pred_check
      _
    $region35: #{tpu_custom_call.1} parent=1 // pred_check_branch
      %90 = sbr.rel (0) target = $region37
    $region36: #{tpu_custom_call.1} parent=1 // pred_region
      _
    $region37: #{tpu_custom_call.1} parent=1 // pred_fallthru
      _
    // Predicated region
    $region38: #{tpu_custom_call.1} parent=1 // pred_check
      _
    $region39: #{tpu_custom_call.1} parent=1 // pred_check_branch
      %92 = sbr.rel (0) target = $region41
    $region40: #{tpu_custom_call.1} parent=1 // pred_region
      %94 = dma.done [#allocation3], 256
    $region41: #{tpu_custom_call.1} parent=1 // pred_fallthru
      _
    // Predicated region
    $region42: #{tpu_custom_call.1} parent=1 // pred_check
      _
    $region43: #{tpu_custom_call.1} parent=1 // pred_check_branch
      %96 = sbr.rel (0) target = $region45
    $region44: #{tpu_custom_call.1} parent=1 // pred_region
      %98 = dma.done [#allocation6], 256
    $region45: #{tpu_custom_call.1} parent=1 // pred_fallthru
      _
    // Predicated region
    $region46: #{tpu_custom_call.1} parent=1 // pred_check
      _
    $region47: #{tpu_custom_call.1} parent=1 // pred_check_branch
      %100 = sbr.rel (0) target = $region49
    $region48: #{tpu_custom_call.1} parent=1 // pred_region
      %102 = dma.done [#allocation6], 2048
    $region49: #{tpu_custom_call.1} parent=1 // pred_fallthru
      _
    // Predicated region
    $region50: #{tpu_custom_call.1} parent=1 // pred_check
      _
    $region51: #{tpu_custom_call.1} parent=1 // pred_check_branch
      %104 = sbr.rel (0) target = $region53
    $region52: #{tpu_custom_call.1} parent=1 // pred_region
      %106 = dma.done [#allocation9], 2048
    $region53: #{tpu_custom_call.1} parent=1 // pred_fallthru
      _
    // Predicated region
    $region54: #{tpu_custom_call.1} parent=1 // pred_check
      _
    $region55: #{tpu_custom_call.1} parent=1 // pred_check_branch
      %108 = sbr.rel (0) target = $region57
    $region56: #{tpu_custom_call.1} parent=1 // pred_region
      %110 = dma.done [#allocation9], 1024
    $region57: #{tpu_custom_call.1} parent=1 // pred_fallthru
      _
    %v112 = vld [vmem:[#allocation2] sm:$0xff]
    %v113 = vld [vmem:[#allocation2 + $0x8] sm:$0xff]
    %v114 = vpack.c.bf16 %v113, %v112
    %v115 = vld [vmem:[#allocation5] sm:$0xf]
    %v116 = vld [vmem:[#allocation5 + $0x4] sm:$0xf]
    %v117 = vld [vmem:[#allocation5 + $0x8] sm:$0xf]
    %v118 = vld [vmem:[#allocation5 + $0xc] sm:$0xf]
    %v119 = vld [vmem:[%s2] sm:$0x1]
    %v121 = vperm.slane %v119, 0
    %v127 = vunpack.c.l.b16 %v115
    %v128 = vunpack.c.l.b16 %v116
    %v129 = vunpack.c.l.b16 %v117
    %v130 = vunpack.c.l.b16 %v118
    %v131 = vpack.c.b16 %v128, %v127
    %v132 = vpack.c.b16 %v130, %v129
    %vm135 = vcmask 261120
    %v137 = vsel %vm135, %v114, 0
    %139 = vmatpush.bf16.msra.mxu0 0
    %140 = vmatpush.bf16.msra.mxu0 0
    %141 = vmatpush.bf16.msra.mxu0 0
    %142 = vmatpush.bf16.msra.mxu0 0
    %143 = vmatpush.bf16.msra.mxu0 0
    %144 = vmatpush.bf16.msra.mxu0 0
    %145 = vmatpush.bf16.msra.mxu0 %v132
    %146 = vmatpush.bf16.msra.mxu0 %v131
    %147 = vmatmul.bf16.gmra.mxu0 %v137
    %v148 = vpop.f32.mrf.mxu0
    %v149 = vadd.f32 %v121, %v148
    %v150 = vpop.f32.mrf.mxu0
    %v151 = vadd.f32 %v121, %v150
    %152 = vdwg.mxu0
    %v153 = vmax.f32 %v149, 0.0
    %v154 = vmax.f32 %v151, 0.0
    %v155 = vpack.c.bf16 %v154, %v153
    %v156 = vld [vmem:[#allocation7] sm:$0xff]
    %v157 = vld [vmem:[#allocation7 + $0x8] sm:$0xff]
    %v158 = vld [vmem:[#allocation7 + $0x10] sm:$0xff]
    %v159 = vld [vmem:[#allocation7 + $0x18] sm:$0xff]
    %v160 = vld [vmem:[#allocation7 + $0x20] sm:$0xff]
    %v161 = vld [vmem:[#allocation7 + $0x28] sm:$0xff]
    %v162 = vld [vmem:[#allocation7 + $0x30] sm:$0xff]
    %v163 = vld [vmem:[#allocation7 + $0x38] sm:$0xff]
    %v164 = vld [vmem:[#allocation7 + $0x40] sm:$0xff]
    %v165 = vld [vmem:[#allocation7 + $0x48] sm:$0xff]
    %v166 = vld [vmem:[#allocation7 + $0x50] sm:$0xff]
    %v167 = vld [vmem:[#allocation7 + $0x58] sm:$0xff]
    %v168 = vld [vmem:[#allocation7 + $0x60] sm:$0xff]
    %v169 = vld [vmem:[#allocation7 + $0x68] sm:$0xff]
    %v170 = vld [vmem:[#allocation7 + $0x70] sm:$0xff]
    %v171 = vld [vmem:[#allocation7 + $0x78] sm:$0xff]
    %v172 = vld [vmem:[%s4] sm:$0x3]
    %v174 = vperm.slane %v172, 0
    %v175 = vperm.slane %v172, 1
    %v194 = vunpack.c.l.b16 %v156
    %v195 = vunpack.c.h.b16 %v156
    %v196 = vunpack.c.l.b16 %v157
    %v197 = vunpack.c.h.b16 %v157
    %v198 = vunpack.c.l.b16 %v158
    %v199 = vunpack.c.h.b16 %v158
    %v200 = vunpack.c.l.b16 %v159
    %v201 = vunpack.c.h.b16 %v159
    %v202 = vunpack.c.l.b16 %v160
    %v203 = vunpack.c.h.b16 %v160
    %v204 = vunpack.c.l.b16 %v161
    %v205 = vunpack.c.h.b16 %v161
    %v206 = vunpack.c.l.b16 %v162
    %v207 = vunpack.c.h.b16 %v162
    %v208 = vunpack.c.l.b16 %v163
    %v209 = vunpack.c.h.b16 %v163
    %v210 = vunpack.c.l.b16 %v164
    %v211 = vunpack.c.h.b16 %v164
    %v212 = vunpack.c.l.b16 %v165
    %v213 = vunpack.c.h.b16 %v165
    %v214 = vunpack.c.l.b16 %v166
    %v215 = vunpack.c.h.b16 %v166
    %v216 = vunpack.c.l.b16 %v167
    %v217 = vunpack.c.h.b16 %v167
    %v218 = vunpack.c.l.b16 %v168
    %v219 = vunpack.c.h.b16 %v168
    %v220 = vunpack.c.l.b16 %v169
    %v221 = vunpack.c.h.b16 %v169
    %v222 = vunpack.c.l.b16 %v170
    %v223 = vunpack.c.h.b16 %v170
    %v224 = vunpack.c.l.b16 %v171
    %v225 = vunpack.c.h.b16 %v171
    %v226 = vpack.c.b16 %v196, %v194
    %v227 = vpack.c.b16 %v197, %v195
    %v228 = vpack.c.b16 %v200, %v198
    %v229 = vpack.c.b16 %v201, %v199
    %v230 = vpack.c.b16 %v204, %v202
    %v231 = vpack.c.b16 %v205, %v203
    %v232 = vpack.c.b16 %v208, %v206
    %v233 = vpack.c.b16 %v209, %v207
    %v234 = vpack.c.b16 %v212, %v210
    %v235 = vpack.c.b16 %v213, %v211
    %v236 = vpack.c.b16 %v216, %v214
    %v237 = vpack.c.b16 %v217, %v215
    %v238 = vpack.c.b16 %v220, %v218
    %v239 = vpack.c.b16 %v221, %v219
    %v240 = vpack.c.b16 %v224, %v222
    %v241 = vpack.c.b16 %v225, %v223
    %258 = vmatpush.bf16.msra.mxu0 %v240
    %259 = vmatpush.bf16.msra.mxu0 %v238
    %260 = vmatpush.bf16.msra.mxu0 %v236
    %261 = vmatpush.bf16.msra.mxu0 %v234
    %262 = vmatpush.bf16.msra.mxu0 %v232
    %263 = vmatpush.bf16.msra.mxu0 %v230
    %264 = vmatpush.bf16.msra.mxu0 %v228
    %265 = vmatpush.bf16.msra.mxu0 %v226
    %266 = vmatmul.bf16.gmra.mxu0 %v155
    %v267 = vpop.f32.mrf.mxu0
    %v268 = vadd.f32 %v174, %v267
    %v269 = vpop.f32.mrf.mxu0
    %v270 = vadd.f32 %v174, %v269
    %271 = vdwg.mxu0
    %272 = vmatpush.bf16.msra.mxu0 %v241
    %273 = vmatpush.bf16.msra.mxu0 %v239
    %274 = vmatpush.bf16.msra.mxu0 %v237
    %275 = vmatpush.bf16.msra.mxu0 %v235
    %276 = vmatpush.bf16.msra.mxu0 %v233
    %277 = vmatpush.bf16.msra.mxu0 %v231
    %278 = vmatpush.bf16.msra.mxu0 %v229
    %279 = vmatpush.bf16.msra.mxu0 %v227
    %280 = vmatmul.bf16.gmra.mxu0 %v155
    %v281 = vpop.f32.mrf.mxu0
    %v282 = vadd.f32 %v175, %v281
    %v283 = vpop.f32.mrf.mxu0
    %v284 = vadd.f32 %v175, %v283
    %285 = vdwg.mxu0
    %v286 = vmax.f32 %v268, 0.0
    %v287 = vmax.f32 %v282, 0.0
    %v288 = vmax.f32 %v270, 0.0
    %v289 = vmax.f32 %v284, 0.0
    %v290 = vpack.c.bf16 %v288, %v286
    %v291 = vpack.c.bf16 %v289, %v287
    %v292 = vld [vmem:[#allocation8] sm:$0xf]
    %v293 = vld [vmem:[#allocation8 + $0x4] sm:$0xf]
    %v294 = vld [vmem:[#allocation8 + $0x8] sm:$0xf]
    %v295 = vld [vmem:[#allocation8 + $0xc] sm:$0xf]
    %v296 = vld [vmem:[#allocation8 + $0x10] sm:$0xf]
    %v297 = vld [vmem:[#allocation8 + $0x14] sm:$0xf]
    %v298 = vld [vmem:[#allocation8 + $0x18] sm:$0xf]
    %v299 = vld [vmem:[#allocation8 + $0x1c] sm:$0xf]
    %v300 = vld [vmem:[#allocation8 + $0x20] sm:$0xf]
    %v301 = vld [vmem:[#allocation8 + $0x24] sm:$0xf]
    %v302 = vld [vmem:[#allocation8 + $0x28] sm:$0xf]
    %v303 = vld [vmem:[#allocation8 + $0x2c] sm:$0xf]
    %v304 = vld [vmem:[#allocation8 + $0x30] sm:$0xf]
    %v305 = vld [vmem:[#allocation8 + $0x34] sm:$0xf]
    %v306 = vld [vmem:[#allocation8 + $0x38] sm:$0xf]
    %v307 = vld [vmem:[#allocation8 + $0x3c] sm:$0xf]
    %v308 = vld [vmem:[#allocation8 + $0x40] sm:$0xf]
    %v309 = vld [vmem:[#allocation8 + $0x44] sm:$0xf]
    %v310 = vld [vmem:[#allocation8 + $0x48] sm:$0xf]
    %v311 = vld [vmem:[#allocation8 + $0x4c] sm:$0xf]
    %v312 = vld [vmem:[#allocation8 + $0x50] sm:$0xf]
    %v313 = vld [vmem:[#allocation8 + $0x54] sm:$0xf]
    %v314 = vld [vmem:[#allocation8 + $0x58] sm:$0xf]
    %v315 = vld [vmem:[#allocation8 + $0x5c] sm:$0xf]
    %v316 = vld [vmem:[#allocation8 + $0x60] sm:$0xf]
    %v317 = vld [vmem:[#allocation8 + $0x64] sm:$0xf]
    %v318 = vld [vmem:[#allocation8 + $0x68] sm:$0xf]
    %v319 = vld [vmem:[#allocation8 + $0x6c] sm:$0xf]
    %v320 = vld [vmem:[#allocation8 + $0x70] sm:$0xf]
    %v321 = vld [vmem:[#allocation8 + $0x74] sm:$0xf]
    %v322 = vld [vmem:[#allocation8 + $0x78] sm:$0xf]
    %v323 = vld [vmem:[#allocation8 + $0x7c] sm:$0xf]
    %v324 = vld [vmem:[%s6] sm:$0x1]
    %v326 = vperm.slane %v324, 0
    %v360 = vunpack.c.l.b16 %v292
    %v361 = vunpack.c.l.b16 %v293
    %v362 = vunpack.c.l.b16 %v294
    %v363 = vunpack.c.l.b16 %v295
    %v364 = vunpack.c.l.b16 %v296
    %v365 = vunpack.c.l.b16 %v297
    %v366 = vunpack.c.l.b16 %v298
    %v367 = vunpack.c.l.b16 %v299
    %v368 = vunpack.c.l.b16 %v300
    %v369 = vunpack.c.l.b16 %v301
    %v370 = vunpack.c.l.b16 %v302
    %v371 = vunpack.c.l.b16 %v303
    %v372 = vunpack.c.l.b16 %v304
    %v373 = vunpack.c.l.b16 %v305
    %v374 = vunpack.c.l.b16 %v306
    %v375 = vunpack.c.l.b16 %v307
    %v376 = vunpack.c.l.b16 %v308
    %v377 = vunpack.c.l.b16 %v309
    %v378 = vunpack.c.l.b16 %v310
    %v379 = vunpack.c.l.b16 %v311
    %v380 = vunpack.c.l.b16 %v312
    %v381 = vunpack.c.l.b16 %v313
    %v382 = vunpack.c.l.b16 %v314
    %v383 = vunpack.c.l.b16 %v315
    %v384 = vunpack.c.l.b16 %v316
    %v385 = vunpack.c.l.b16 %v317
    %v386 = vunpack.c.l.b16 %v318
    %v387 = vunpack.c.l.b16 %v319
    %v388 = vunpack.c.l.b16 %v320
    %v389 = vunpack.c.l.b16 %v321
    %v390 = vunpack.c.l.b16 %v322
    %v391 = vunpack.c.l.b16 %v323
    %v392 = vpack.c.b16 %v361, %v360
    %v393 = vpack.c.b16 %v363, %v362
    %v394 = vpack.c.b16 %v365, %v364
    %v395 = vpack.c.b16 %v367, %v366
    %v396 = vpack.c.b16 %v369, %v368
    %v397 = vpack.c.b16 %v371, %v370
    %v398 = vpack.c.b16 %v373, %v372
    %v399 = vpack.c.b16 %v375, %v374
    %v400 = vpack.c.b16 %v377, %v376
    %v401 = vpack.c.b16 %v379, %v378
    %v402 = vpack.c.b16 %v381, %v380
    %v403 = vpack.c.b16 %v383, %v382
    %v404 = vpack.c.b16 %v385, %v384
    %v405 = vpack.c.b16 %v387, %v386
    %v406 = vpack.c.b16 %v389, %v388
    %v407 = vpack.c.b16 %v391, %v390
    %424 = vmatpush.bf16.msra.mxu0 %v399
    %425 = vmatpush.bf16.msra.mxu0 %v398
    %426 = vmatpush.bf16.msra.mxu0 %v397
    %427 = vmatpush.bf16.msra.mxu0 %v396
    %428 = vmatpush.bf16.msra.mxu0 %v395
    %429 = vmatpush.bf16.msra.mxu0 %v394
    %430 = vmatpush.bf16.msra.mxu0 %v393
    %431 = vmatpush.bf16.msra.mxu0 %v392
    %432 = vmatmul.bf16.gmra.mxu0 %v290
    %v433 = vpop.f32.mrf.mxu0
    %v434 = vadd.f32 %v326, %v433
    %v435 = vpop.f32.mrf.mxu0
    %v436 = vadd.f32 %v326, %v435
    %437 = vdwg.mxu0
    %438 = vmatpush.bf16.msra.mxu0 %v407
    %439 = vmatpush.bf16.msra.mxu0 %v406
    %440 = vmatpush.bf16.msra.mxu0 %v405
    %441 = vmatpush.bf16.msra.mxu0 %v404
    %442 = vmatpush.bf16.msra.mxu0 %v403
    %443 = vmatpush.bf16.msra.mxu0 %v402
    %444 = vmatpush.bf16.msra.mxu0 %v401
    %445 = vmatpush.bf16.msra.mxu0 %v400
    %446 = vmatmul.bf16.gmra.mxu0 %v291
    %v447 = vpop.f32.mrf.mxu0
    %v448 = vadd.f32 %v434, %v447
    %v449 = vpop.f32.mrf.mxu0
    %v450 = vadd.f32 %v436, %v449
    %451 = vdwg.mxu0
    %v452 = vmax.f32 %v448, 0.0
    %v453 = vmax.f32 %v450, 0.0
    %v454 = vpack.c.bf16 %v453, %v452
    %v455 = vld [vmem:[#allocation10] sm:$0xf]
    %v456 = vld [vmem:[#allocation10 + $0x4] sm:$0xf]
    %v457 = vld [vmem:[#allocation10 + $0x8] sm:$0xf]
    %v458 = vld [vmem:[#allocation10 + $0xc] sm:$0xf]
    %v459 = vld [vmem:[#allocation10 + $0x10] sm:$0xf]
    %v460 = vld [vmem:[#allocation10 + $0x14] sm:$0xf]
    %v461 = vld [vmem:[#allocation10 + $0x18] sm:$0xf]
    %v462 = vld [vmem:[#allocation10 + $0x1c] sm:$0xf]
    %v463 = vld [vmem:[#allocation10 + $0x20] sm:$0xf]
    %v464 = vld [vmem:[#allocation10 + $0x24] sm:$0xf]
    %v465 = vld [vmem:[#allocation10 + $0x28] sm:$0xf]
    %v466 = vld [vmem:[#allocation10 + $0x2c] sm:$0xf]
    %v467 = vld [vmem:[#allocation10 + $0x30] sm:$0xf]
    %v468 = vld [vmem:[#allocation10 + $0x34] sm:$0xf]
    %v469 = vld [vmem:[#allocation10 + $0x38] sm:$0xf]
    %v470 = vld [vmem:[#allocation10 + $0x3c] sm:$0xf]
    %v471 = vld [vmem:[%s8] sm:$0x1]
    %v473 = vperm.slane %v471, 0
    %v491 = vunpack.c.l.b16 %v455
    %v492 = vunpack.c.l.b16 %v456
    %v493 = vunpack.c.l.b16 %v457
    %v494 = vunpack.c.l.b16 %v458
    %v495 = vunpack.c.l.b16 %v459
    %v496 = vunpack.c.l.b16 %v460
    %v497 = vunpack.c.l.b16 %v461
    %v498 = vunpack.c.l.b16 %v462
    %v499 = vunpack.c.l.b16 %v463
    %v500 = vunpack.c.l.b16 %v464
    %v501 = vunpack.c.l.b16 %v465
    %v502 = vunpack.c.l.b16 %v466
    %v503 = vunpack.c.l.b16 %v467
    %v504 = vunpack.c.l.b16 %v468
    %v505 = vunpack.c.l.b16 %v469
    %v506 = vunpack.c.l.b16 %v470
    %v507 = vpack.c.b16 %v492, %v491
    %v508 = vpack.c.b16 %v494, %v493
    %v509 = vpack.c.b16 %v496, %v495
    %v510 = vpack.c.b16 %v498, %v497
    %v511 = vpack.c.b16 %v500, %v499
    %v512 = vpack.c.b16 %v502, %v501
    %v513 = vpack.c.b16 %v504, %v503
    %v514 = vpack.c.b16 %v506, %v505
    %523 = vmatpush.bf16.msra.mxu0 %v514
    %524 = vmatpush.bf16.msra.mxu0 %v513
    %525 = vmatpush.bf16.msra.mxu0 %v512
    %526 = vmatpush.bf16.msra.mxu0 %v511
    %527 = vmatpush.bf16.msra.mxu0 %v510
    %528 = vmatpush.bf16.msra.mxu0 %v509
    %529 = vmatpush.bf16.msra.mxu0 %v508
    %530 = vmatpush.bf16.msra.mxu0 %v507
    %531 = vmatmul.bf16.gmra.mxu0 %v454
    %v532 = vpop.f32.mrf.mxu0
    %v533 = vadd.f32 %v473, %v532
    %v534 = vpop.f32.mrf.mxu0
    %v535 = vadd.f32 %v473, %v534
    %536 = vdwg.mxu0
    %537 = vst [vmem:[#allocation11] sm:$0xff] %v533
    %538 = vst [vmem:[#allocation11 + $0x8] sm:$0xff] %v535
    // Predicated region
    $region58: #{tpu_custom_call.1} parent=1 // pred_check
      _
    $region59: #{tpu_custom_call.1} parent=1 // pred_check_branch
      %540 = sbr.rel (0) target = $region61
    $region60: #{tpu_custom_call.1} parent=1 // pred_region
      %542 = vsyncadd [#allocation4], 0
      %s543 = sshll.u32 [#allocation11], 4
      %s544 = int_to_ptr.vmem [resolvable:$true] %s543
      %s545 = sshll.u32 %s9, 4
      %s546 = int_to_ptr.hbm [resolvable:$true] %s545
      %551 = dma.vmem_to_hbm [thread:$0]  %s544, 256, %s546, [#allocation4], 128, 128, 8
    $region61: #{tpu_custom_call.1} parent=1 // pred_fallthru
      _
    // Predicated region
    $region62: #{tpu_custom_call.1} parent=1 // pred_check
      _
    $region63: #{tpu_custom_call.1} parent=1 // pred_check_branch
      %553 = sbr.rel (0) target = $region65
    $region64: #{tpu_custom_call.1} parent=1 // pred_region
      %555 = dma.done [#allocation4], 256
    $region65: #{tpu_custom_call.1} parent=1 // pred_fallthru
      _
    %556 = vsyncpa [#allocation3], 1
    %557 = vsyncpa [#allocation6], 1
    %558 = vsyncpa [#allocation9], 1
    %559 = vsyncpa [#allocation4], 1

</llo_original>
